<compile_context>
chip_gen: v7x
topology: tpu7x:2x2x1
jax: 0.10.0
libtpu: 0.0.40
codegen_flags: <defaults>
</compile_context>

<pallas_src>
import functools

import jax
import jax.numpy as jnp
from jax.experimental import pallas as pl
from jax.experimental.pallas import tpu as pltpu


# ----------------------------------------------------------------------------
# Fused kernel: whole AE forward for one batch tile.
# ----------------------------------------------------------------------------
def _ae_fused_kernel(x_ref, w_ref, b_ref, o_ref, *, num_layers):
    # x_ref: [tm, Fp]          (batch tile, lane-padded features)
    # w_ref: [L, Fp, Fp]       (all layer weights, zero-padded, resident in VMEM)
    # b_ref: [L, 1, Fp]        (all layer biases, zero-padded)
    h = x_ref[...].astype(jnp.float32)
    for l in range(num_layers):                      # static unroll (L is small)
        z = jnp.dot(h, w_ref[l], preferred_element_type=jnp.float32)  # MXU
        z = z + b_ref[l]                             # [1, Fp] broadcasts over rows
        h = jnp.cos(z) - z                           # CosineActivation (EUP + VPU)
    o_ref[...] = h.astype(o_ref.dtype)


def ae_forward_fused(x_pad, w_slab, b_slab, *, tm=None):
    """Single fused pallas_call over the whole autoencoder.

    x_pad:  [Bp, Fp]      zero-padded input  (Bp multiple of 8, Fp multiple of 128)
    w_slab: [L, Fp, Fp]   zero-padded weights (stored as in_features x out_features)
    b_slab: [L, 1, Fp]    zero-padded biases
    returns [Bp, Fp] padded output.
    """
    Bp, Fp = x_pad.shape
    L = w_slab.shape[0]
    if tm is None:
        tm = min(Bp, 256)          # 256-aligned batch tiles for large B; Bp itself if small
    assert Bp % tm == 0

    kernel = functools.partial(_ae_fused_kernel, num_layers=L)
    return pl.pallas_call(
        kernel,
        out_shape=jax.ShapeDtypeStruct((Bp, Fp), jnp.float32),
        grid=(Bp // tm,),
        in_specs=[
            pl.BlockSpec((tm, Fp), lambda i: (i, 0)),       # batch tile of x
            pl.BlockSpec((L, Fp, Fp), lambda i: (0, 0, 0)),  # whole weight slab, resident
            pl.BlockSpec((L, 1, Fp), lambda i: (0, 0, 0)),   # whole bias slab, resident
        ],
        out_specs=pl.BlockSpec((tm, Fp), lambda i: (i, 0)),  # lane-dense output tile
        compiler_params=pltpu.CompilerParams(
            dimension_semantics=("parallel",)),              # shard batch tiles across TCs
    )(x_pad, w_slab, b_slab)


# ----------------------------------------------------------------------------
# Parameter construction / packing
# ----------------------------------------------------------------------------
def init_ae_params(layer_sizes, key):
    """Deterministic params mirroring the PyTorch AE layer structure.

    encoder: Linear(l[i] -> l[i+1]) for i in 0..n-2
    decoder: Linear(l[i] -> l[i-1]) for i in n-1..1
    Weights stored as [in_features, out_features] (PyTorch weight.T).
    """
    params = {"encoder": [], "decoder": []}
    for i in range(len(layer_sizes) - 1):
        fin, fout = layer_sizes[i], layer_sizes[i + 1]
        key, kw, kb = jax.random.split(key, 3)
        bound = 1.0 / jnp.sqrt(fin)
        w = jax.random.uniform(kw, (fin, fout), jnp.float32, -bound, bound)
        b = jax.random.uniform(kb, (fout,), jnp.float32, -bound, bound)
        params["encoder"].append((w, b))
    for i in range(len(layer_sizes) - 1, 0, -1):
        fin, fout = layer_sizes[i], layer_sizes[i - 1]
        key, kw, kb = jax.random.split(key, 3)
        bound = 1.0 / jnp.sqrt(fin)
        w = jax.random.uniform(kw, (fin, fout), jnp.float32, -bound, bound)
        b = jax.random.uniform(kb, (fout,), jnp.float32, -bound, bound)
        params["decoder"].append((w, b))
    return params


def pack_params(params, fp):
    """Zero-pad every layer's (w, b) to [fp, fp] / [1, fp] and stack into slabs."""
    ws, bs = [], []
    for (w, b) in params["encoder"] + params["decoder"]:
        fin, fout = w.shape
        wp = jnp.zeros((fp, fp), jnp.float32).at[:fin, :fout].set(w)
        bp = jnp.zeros((1, fp), jnp.float32).at[0, :fout].set(b)
        ws.append(wp)
        bs.append(bp)
    return jnp.stack(ws, axis=0), jnp.stack(bs, axis=0)


def ae_forward_ref(params, x):
    """Pure-JAX reference for correctness."""
    h = x
    for (w, b) in params["encoder"] + params["decoder"]:
        z = h @ w + b
        h = jnp.cos(z) - z
    return h


def _round_up(v, m):
    return ((v + m - 1) // m) * m


# ----------------------------------------------------------------------------
# Main
# ----------------------------------------------------------------------------
if __name__ == "__main__":
    layer_sizes = [32, 16, 8]        # encoder 32->16->8, decoder 8->16->32
    batch = 8

    key = jax.random.PRNGKey(0)
    key, kx = jax.random.split(key)
    x = jax.random.normal(kx, (batch, layer_sizes[0]), jnp.float32)

    params = init_ae_params(layer_sizes, key)

    # Lane-dense padded width (multiple of 128 covering every layer size).
    Fp = _round_up(max(layer_sizes), 128)
    # Sublane-aligned padded batch.
    Bp = _round_up(batch, 8)
    tm = min(Bp, 256)
    Bp = _round_up(Bp, tm)

    w_slab, b_slab = pack_params(params, Fp)
    x_pad = jnp.zeros((Bp, Fp), jnp.float32).at[:batch, :layer_sizes[0]].set(x)

    fused = jax.jit(functools.partial(ae_forward_fused, tm=tm))
    out_pad = fused(x_pad, w_slab, b_slab)
    out_pad = jax.block_until_ready(out_pad)

    # Slice off lane / sublane padding before comparing.
    out = out_pad[:batch, :layer_sizes[0]]

    ref = ae_forward_ref(params, x)
    assert out.shape == (batch, layer_sizes[0])
    assert jnp.allclose(out, ref, atol=1e-5, rtol=1e-5), "mismatch vs JAX reference"

    print("KERNEL_OK")
</pallas_src>

<mosaic_0001>
module attributes {stable_mosaic.version = 11 : i64} {
  func.func @_ae_fused_kernel(%arg0: i32, %arg1: memref<8x128xf32, #tpu.memory_space<vmem>>, %arg2: memref<4x128x128xf32, #tpu.memory_space<vmem>>, %arg3: memref<4x1x128xf32, #tpu.memory_space<vmem>>, %arg4: memref<8x128xf32, #tpu.memory_space<vmem>>) attributes {dimension_semantics = [#tpu.dimension_semantics<parallel>], iteration_bounds = array<i64: 1>, scalar_prefetch = 0 : i64, scratch_operands = 0 : i64, tpu.core_type = #tpu.core_type<tc>, window_params = [{transform_indices = @transform_0, window_bounds = array<i64: 8, 128>}, {pipeline_mode = #tpu.pipeline_mode<synchronous>, transform_indices = @transform_1, window_bounds = array<i64: 4, 128, 128>}, {pipeline_mode = #tpu.pipeline_mode<synchronous>, transform_indices = @transform_2, window_bounds = array<i64: 4, 1, 128>}, {transform_indices = @transform_3, window_bounds = array<i64: 8, 128>}]} {
    %c0 = arith.constant 0 : index
    %c0_0 = arith.constant 0 : index
    %0 = vector.load %arg1[%c0, %c0_0] : memref<8x128xf32, #tpu.memory_space<vmem>>, vector<8x128xf32>
    %c0_1 = arith.constant 0 : index
    %c0_2 = arith.constant 0 : index
    %c0_3 = arith.constant 0 : index
    %1 = vector.load %arg2[%c0_1, %c0_2, %c0_3] : memref<4x128x128xf32, #tpu.memory_space<vmem>>, vector<1x128x128xf32>
    %2 = vector.shape_cast %1 : vector<1x128x128xf32> to vector<128x128xf32>
    %cst = arith.constant dense<0.000000e+00> : vector<8x128xf32>
    %3 = tpu.matmul %0, %2, %cst {dimension_numbers = #tpu.dot_dimension_numbers<[1], [0], [0], [1], [0, 0, 1, 1], [], []>} : vector<8x128xf32>, vector<128x128xf32>, vector<8x128xf32> -> vector<8x128xf32>
    %c0_4 = arith.constant 0 : index
    %c0_5 = arith.constant 0 : index
    %c0_6 = arith.constant 0 : index
    %4 = vector.load %arg3[%c0_4, %c0_5, %c0_6] : memref<4x1x128xf32, #tpu.memory_space<vmem>>, vector<1x1x128xf32>
    %5 = vector.shape_cast %4 : vector<1x1x128xf32> to vector<1x128xf32>
    %6 = vector.broadcast %5 : vector<1x128xf32> to vector<8x128xf32>
    %7 = arith.addf %3, %6 : vector<8x128xf32>
    %8 = math.cos %7 : vector<8x128xf32>
    %9 = arith.subf %8, %7 : vector<8x128xf32>
    %c1 = arith.constant 1 : index
    %c0_7 = arith.constant 0 : index
    %c0_8 = arith.constant 0 : index
    %10 = vector.load %arg2[%c1, %c0_7, %c0_8] : memref<4x128x128xf32, #tpu.memory_space<vmem>>, vector<1x128x128xf32>
    %11 = vector.shape_cast %10 : vector<1x128x128xf32> to vector<128x128xf32>
    %cst_9 = arith.constant dense<0.000000e+00> : vector<8x128xf32>
    %12 = tpu.matmul %9, %11, %cst_9 {dimension_numbers = #tpu.dot_dimension_numbers<[1], [0], [0], [1], [0, 0, 1, 1], [], []>} : vector<8x128xf32>, vector<128x128xf32>, vector<8x128xf32> -> vector<8x128xf32>
    %c1_10 = arith.constant 1 : index
    %c0_11 = arith.constant 0 : index
    %c0_12 = arith.constant 0 : index
    %13 = vector.load %arg3[%c1_10, %c0_11, %c0_12] : memref<4x1x128xf32, #tpu.memory_space<vmem>>, vector<1x1x128xf32>
    %14 = vector.shape_cast %13 : vector<1x1x128xf32> to vector<1x128xf32>
    %15 = vector.broadcast %14 : vector<1x128xf32> to vector<8x128xf32>
    %16 = arith.addf %12, %15 : vector<8x128xf32>
    %17 = math.cos %16 : vector<8x128xf32>
    %18 = arith.subf %17, %16 : vector<8x128xf32>
    %c2 = arith.constant 2 : index
    %c0_13 = arith.constant 0 : index
    %c0_14 = arith.constant 0 : index
    %19 = vector.load %arg2[%c2, %c0_13, %c0_14] : memref<4x128x128xf32, #tpu.memory_space<vmem>>, vector<1x128x128xf32>
    %20 = vector.shape_cast %19 : vector<1x128x128xf32> to vector<128x128xf32>
    %cst_15 = arith.constant dense<0.000000e+00> : vector<8x128xf32>
    %21 = tpu.matmul %18, %20, %cst_15 {dimension_numbers = #tpu.dot_dimension_numbers<[1], [0], [0], [1], [0, 0, 1, 1], [], []>} : vector<8x128xf32>, vector<128x128xf32>, vector<8x128xf32> -> vector<8x128xf32>
    %c2_16 = arith.constant 2 : index
    %c0_17 = arith.constant 0 : index
    %c0_18 = arith.constant 0 : index
    %22 = vector.load %arg3[%c2_16, %c0_17, %c0_18] : memref<4x1x128xf32, #tpu.memory_space<vmem>>, vector<1x1x128xf32>
    %23 = vector.shape_cast %22 : vector<1x1x128xf32> to vector<1x128xf32>
    %24 = vector.broadcast %23 : vector<1x128xf32> to vector<8x128xf32>
    %25 = arith.addf %21, %24 : vector<8x128xf32>
    %26 = math.cos %25 : vector<8x128xf32>
    %27 = arith.subf %26, %25 : vector<8x128xf32>
    %c3 = arith.constant 3 : index
    %c0_19 = arith.constant 0 : index
    %c0_20 = arith.constant 0 : index
    %28 = vector.load %arg2[%c3, %c0_19, %c0_20] : memref<4x128x128xf32, #tpu.memory_space<vmem>>, vector<1x128x128xf32>
    %29 = vector.shape_cast %28 : vector<1x128x128xf32> to vector<128x128xf32>
    %cst_21 = arith.constant dense<0.000000e+00> : vector<8x128xf32>
    %30 = tpu.matmul %27, %29, %cst_21 {dimension_numbers = #tpu.dot_dimension_numbers<[1], [0], [0], [1], [0, 0, 1, 1], [], []>} : vector<8x128xf32>, vector<128x128xf32>, vector<8x128xf32> -> vector<8x128xf32>
    %c3_22 = arith.constant 3 : index
    %c0_23 = arith.constant 0 : index
    %c0_24 = arith.constant 0 : index
    %31 = vector.load %arg3[%c3_22, %c0_23, %c0_24] : memref<4x1x128xf32, #tpu.memory_space<vmem>>, vector<1x1x128xf32>
    %32 = vector.shape_cast %31 : vector<1x1x128xf32> to vector<1x128xf32>
    %33 = vector.broadcast %32 : vector<1x128xf32> to vector<8x128xf32>
    %34 = arith.addf %30, %33 : vector<8x128xf32>
    %35 = math.cos %34 : vector<8x128xf32>
    %36 = arith.subf %35, %34 : vector<8x128xf32>
    %c0_25 = arith.constant 0 : index
    %c0_26 = arith.constant 0 : index
    %37 = vector.load %arg4[%c0_25, %c0_26] : memref<8x128xf32, #tpu.memory_space<vmem>>, vector<8x128xf32>
    tpu.vector_store %arg4[%c0_25, %c0_26], %36 {strides = array<i32>} : memref<8x128xf32, #tpu.memory_space<vmem>>, vector<8x128xf32>,
    return
  }
  func.func @transform_0(%arg0: i32) -> (i32, i32) {
    %c0_i32 = arith.constant 0 : i32
    %c0_i32_0 = arith.constant 0 : i32
    return %arg0, %c0_i32 : i32, i32
  }
  func.func @transform_1(%arg0: i32) -> (i32, i32, i32) {
    %c0_i32 = arith.constant 0 : i32
    %c0_i32_0 = arith.constant 0 : i32
    %c0_i32_1 = arith.constant 0 : i32
    %c0_i32_2 = arith.constant 0 : i32
    return %c0_i32, %c0_i32_0, %c0_i32_1 : i32, i32, i32
  }
  func.func @transform_2(%arg0: i32) -> (i32, i32, i32) {
    %c0_i32 = arith.constant 0 : i32
    %c0_i32_0 = arith.constant 0 : i32
    %c0_i32_1 = arith.constant 0 : i32
    %c0_i32_2 = arith.constant 0 : i32
    return %c0_i32, %c0_i32_0, %c0_i32_1 : i32, i32, i32
  }
  func.func @transform_3(%arg0: i32) -> (i32, i32) {
    %c0_i32 = arith.constant 0 : i32
    %c0_i32_0 = arith.constant 0 : i32
    return %arg0, %c0_i32 : i32, i32
  }
}

</mosaic_0001>

<llo_original>
// kernel: ae_forward_fused.1
$region0: #{ae_forward_fused.1}
  #allocation0 [shape = 'u32[]', space=smem, size = 0x4, offset = 0x4, fixed_abs, tag = 'smem constant byte address 0x4 - core index']
  #allocation1 [shape = 'u32[144,128]{1,0:T(1,128)}', space=vmem, size = 0x12000, scoped, tag = 'internal scratch']
  %s0 = inlined_call_operand.hbm [shape: f32[8,128], index: 0, kind: input, shape index: {}]
  %s1 = inlined_call_operand.hbm [shape: f32[4,128,128], index: 1, kind: input, shape index: {}]
  %s2 = inlined_call_operand.vmem [shape: f32[4,1,128], index: 2, kind: input, shape index: {}]
  %s3 = inlined_call_operand.hbm [shape: f32[8,128], index: 3, kind: output, shape index: {}]
  %s4 = sld [smem:[#allocation0]]
  $region30: #{ae_forward_fused.1} parent=0
    _
  %s6 = ssub.s32 1, %s4
  %s7 = scalar_select 0, %s6, %s4
  $region1: #{ae_forward_fused.1} parent=0
    #allocation2 [shape = 'u8[4096]{0}', space=vmem, size = 0x1000, scoped, tag = 'input window, operand 0, single buffered']
    #allocation3 [shape = 's32[1]{0}', space=sflag, size = 0x4, scoped, tag = 'scoped memory for ae_forward_fused.1']
    #allocation4 [shape = 's32[1]{0}', space=sflag, size = 0x4, scoped, tag = 'scoped memory for ae_forward_fused.1']
    #allocation5 [shape = 'u8[262144]{0}', space=vmem, size = 0x40000, scoped, tag = 'input window, operand 1, single buffered']
    #allocation6 [shape = 's32[1]{0}', space=sflag, size = 0x4, scoped, tag = 'scoped memory for ae_forward_fused.1']
    #allocation7 [shape = 'u8[4096]{0}', space=vmem, size = 0x1000, scoped, tag = 'output window, operand 0, single buffered']
    %8 = vsyncpa [#allocation3], 0
    %9 = vsyncpa [#allocation6], 0
    %10 = vsyncpa [#allocation4], 0
    // Predicated region
    $region2: #{ae_forward_fused.1} parent=1 // pred_check
      _
    $region3: #{ae_forward_fused.1} parent=1 // pred_check_branch
      %12 = sbr.rel (0) target = $region5
    $region4: #{ae_forward_fused.1} parent=1 // pred_region
      %s14 = ssub.s32 128, 128
      %15 = vsyncadd [#allocation3], %s14
      %s17 = sshll.u32 [#allocation2], 4
      %s18 = int_to_ptr.vmem [resolvable:$true] %s17
      %20 = dma.hbm_to_vmem [thread:$0]  %s0, 128, %s18, [#allocation3]
    $region5: #{ae_forward_fused.1} parent=1 // pred_fallthru
      _
    // Predicated region
    $region6: #{ae_forward_fused.1} parent=1 // pred_check
      _
    $region7: #{ae_forward_fused.1} parent=1 // pred_check_branch
      %22 = sbr.rel (0) target = $region9
    $region8: #{ae_forward_fused.1} parent=1 // pred_region
      %s24 = ssub.s32 8192, 8192
      %25 = vsyncadd [#allocation6], %s24
      %s26 = sshll.u32 [#allocation5], 4
      %s27 = int_to_ptr.vmem [resolvable:$true] %s26
      %32 = dma.hbm_to_vmem [thread:$0]  %s1, 8192, %s27, [#allocation6], 128, 128, 8
    $region9: #{ae_forward_fused.1} parent=1 // pred_fallthru
      _
    // Predicated region
    $region10: #{ae_forward_fused.1} parent=1 // pred_check
      _
    $region11: #{ae_forward_fused.1} parent=1 // pred_check_branch
      %34 = sbr.rel (0) target = $region13
    $region12: #{ae_forward_fused.1} parent=1 // pred_region
      _
    $region13: #{ae_forward_fused.1} parent=1 // pred_fallthru
      _
    // Predicated region
    $region14: #{ae_forward_fused.1} parent=1 // pred_check
      _
    $region15: #{ae_forward_fused.1} parent=1 // pred_check_branch
      %36 = sbr.rel (0) target = $region17
    $region16: #{ae_forward_fused.1} parent=1 // pred_region
      %37 = dma.done [#allocation3], 128
    $region17: #{ae_forward_fused.1} parent=1 // pred_fallthru
      _
    // Predicated region
    $region18: #{ae_forward_fused.1} parent=1 // pred_check
      _
    $region19: #{ae_forward_fused.1} parent=1 // pred_check_branch
      %39 = sbr.rel (0) target = $region21
    $region20: #{ae_forward_fused.1} parent=1 // pred_region
      %40 = dma.done [#allocation6], 8192
    $region21: #{ae_forward_fused.1} parent=1 // pred_fallthru
      _
    %v41 = vld [vmem:[#allocation2] sm:$0xff]
    %v42 = vld [vmem:[#allocation5] sm:$0xff]
    %v43 = vld [vmem:[#allocation5 + $0x8] sm:$0xff]
    %v44 = vld [vmem:[#allocation5 + $0x10] sm:$0xff]
    %v45 = vld [vmem:[#allocation5 + $0x18] sm:$0xff]
    %v46 = vld [vmem:[#allocation5 + $0x20] sm:$0xff]
    %v47 = vld [vmem:[#allocation5 + $0x28] sm:$0xff]
    %v48 = vld [vmem:[#allocation5 + $0x30] sm:$0xff]
    %v49 = vld [vmem:[#allocation5 + $0x38] sm:$0xff]
    %v50 = vld [vmem:[#allocation5 + $0x40] sm:$0xff]
    %v51 = vld [vmem:[#allocation5 + $0x48] sm:$0xff]
    %v52 = vld [vmem:[#allocation5 + $0x50] sm:$0xff]
    %v53 = vld [vmem:[#allocation5 + $0x58] sm:$0xff]
    %v54 = vld [vmem:[#allocation5 + $0x60] sm:$0xff]
    %v55 = vld [vmem:[#allocation5 + $0x68] sm:$0xff]
    %v56 = vld [vmem:[#allocation5 + $0x70] sm:$0xff]
    %v57 = vld [vmem:[#allocation5 + $0x78] sm:$0xff]
    %v58 = vld [vmem:[%s2] sm:$0x1]
    %v60 = vlaneseq
    %v61 = vshrl.u32 %v60, 7
    %v62 = vsub.s32 0, %v61
    %v63 = vrot.slane %v58, %v62
    %65 = vmatprep.subr.mxu0 0.0
    %66 = vmatpush1.msra.mxu0 %v42
    %67 = vmatprep.subr.mxu0 0.0
    %68 = vmatpush1.msra.mxu0 %v43
    %69 = vmatprep.subr.mxu0 0.0
    %70 = vmatpush1.msra.mxu0 %v44
    %71 = vmatprep.subr.mxu0 0.0
    %72 = vmatpush1.msra.mxu0 %v45
    %73 = vmatprep.subr.mxu0 0.0
    %74 = vmatpush1.msra.mxu0 %v46
    %75 = vmatprep.subr.mxu0 0.0
    %76 = vmatpush1.msra.mxu0 %v47
    %77 = vmatprep.subr.mxu0 0.0
    %78 = vmatpush1.msra.mxu0 %v48
    %79 = vmatprep.subr.mxu0 0.0
    %80 = vmatpush1.msra.mxu0 %v49
    %81 = vmatprep.subr.mxu0 0.0
    %82 = vmatpush1.msra.mxu0 %v50
    %83 = vmatprep.subr.mxu0 0.0
    %84 = vmatpush1.msra.mxu0 %v51
    %85 = vmatprep.subr.mxu0 0.0
    %86 = vmatpush1.msra.mxu0 %v52
    %87 = vmatprep.subr.mxu0 0.0
    %88 = vmatpush1.msra.mxu0 %v53
    %89 = vmatprep.subr.mxu0 0.0
    %90 = vmatpush1.msra.mxu0 %v54
    %91 = vmatprep.subr.mxu0 0.0
    %92 = vmatpush1.msra.mxu0 %v55
    %93 = vmatprep.subr.mxu0 0.0
    %94 = vmatpush1.msra.mxu0 %v56
    %95 = vmatprep.subr.mxu0 0.0
    %96 = vmatpush1.msra.mxu0 %v57
    %97 = vmatprep.subr.mxu0 0.0
    %98 = vmatpush1.msra.mxu0 0.0
    %99 = vmatprep.subr.mxu0 0.0
    %100 = vmatpush1.msra.mxu0 0.0
    %101 = vmatprep.subr.mxu0 0.0
    %102 = vmatpush1.msra.mxu0 0.0
    %103 = vmatprep.subr.mxu0 0.0
    %104 = vmatpush1.msra.mxu0 0.0
    %105 = vmatprep.subr.mxu0 0.0
    %106 = vmatpush1.msra.mxu0 0.0
    %107 = vmatprep.subr.mxu0 0.0
    %108 = vmatpush1.msra.mxu0 0.0
    %109 = vmatprep.subr.mxu0 0.0
    %110 = vmatpush1.msra.mxu0 0.0
    %111 = vmatprep.subr.mxu0 0.0
    %112 = vmatpush1.msra.mxu0 0.0
    %113 = vmatprep.subr.mxu0 0.0
    %114 = vmatpush1.msra.mxu0 0.0
    %115 = vmatprep.subr.mxu0 0.0
    %116 = vmatpush1.msra.mxu0 0.0
    %117 = vmatprep.subr.mxu0 0.0
    %118 = vmatpush1.msra.mxu0 0.0
    %119 = vmatprep.subr.mxu0 0.0
    %120 = vmatpush1.msra.mxu0 0.0
    %121 = vmatprep.subr.mxu0 0.0
    %122 = vmatpush1.msra.mxu0 0.0
    %123 = vmatprep.subr.mxu0 0.0
    %124 = vmatpush1.msra.mxu0 0.0
    %125 = vmatprep.subr.mxu0 0.0
    %126 = vmatpush1.msra.mxu0 0.0
    %127 = vmatprep.subr.mxu0 0.0
    %128 = vmatpush1.msra.mxu0 0.0
    %129 = vmatprep.mubr.f32.mxu0 0.0
    %130 = vmatmul.mubr.f32.gmra.mrb[0].mxu0 %v41
    %v131 = vpop.f32.mrb[0].mxu0
    %v132 = vadd.f32 %v63, %v131
    %v133 = vpop.f32.mrb[0].mxu0
    %134 = vdwg.mxu0
    %v135 = vand.u32 2147483647, %v132
    %vm136 = vcmp.le.f32.partialorder %v135, 0.7853982
    %vm137 = vcmp.lt.s32.totalorder %v132, 0
    %v138 = vand.u32 %v132, 2139095040
    %v139 = vshrl.u32 %v138, 23
    %v140 = vsub.s32 %v139, 127
    %v141 = vand.u32 2147483647, %v132
    %v142 = vand.u32 %v141, 8388607
    %v143 = vor.u32 %v142, 8388608
    %v144 = vsub.s32 0, %v143
    %v145 = vadd.s32 %v140, 1
    %vm146 = vcmp.gt.s32.totalorder %v145, 0
    %v147 = vsel %vm146, %v145, 0
    %v148 = vshrl.u32 %v147, 5
    %v149 = vand.u32 %v147, 31
    %v150 = vsub.s32 32, %v149
    %v151 = vshrl.u32 683565275, %v150
    %v152 = vshll.u32 683565275, %v149
    %v153 = vshrl.u32 2475754826, %v150
    %v154 = vor.u32 %v152, %v153
    %v155 = vshll.u32 2475754826, %v149
    %v156 = vshrl.u32 2131351028, %v150
    %v157 = vor.u32 %v155, %v156
    %v158 = vshll.u32 2131351028, %v149
    %v159 = vshrl.u32 2102212464, %v150
    %v160 = vor.u32 %v158, %v159
    %v161 = vshll.u32 2102212464, %v149
    %v162 = vshrl.u32 920167782, %v150
    %v163 = vor.u32 %v161, %v162
    %v164 = vshll.u32 920167782, %v149
    %v165 = vshrl.u32 1326507024, %v150
    %v166 = vor.u32 %v164, %v165
    %vm167 = vcmp.lt.s32.totalorder %v148, 1
    %vm168 = vcmp.lt.s32.totalorder %v148, 2
    %vm169 = vcmp.lt.s32.totalorder %v148, 3
    %vm170 = vcmp.lt.s32.totalorder %v148, 4
    %v171 = vsel %vm167, %v151, %v154
    %v172 = vsel %vm170, %v160, 2102212464
    %v173 = vsel %vm169, %v157, %v172
    %v174 = vsel %vm168, %v171, %v173
    %v175 = vsel %vm167, %v154, %v157
    %v176 = vsel %vm170, %v163, 920167782
    %v177 = vsel %vm169, %v160, %v176
    %v178 = vsel %vm168, %v175, %v177
    %v179 = vsel %vm167, %v157, %v160
    %v180 = vsel %vm170, %v166, 1326507024
    %v181 = vsel %vm169, %v163, %v180
    %v182 = vsel %vm168, %v179, %v181
    %v183 = vshll.u32 %v143, 8
    %v184 = vmul.u32.u64.compose %v183, %v182
    %v185 = vextract.low.u32 %v184
    %v186 = vextract.high.u32 %v184
    %v187 = vmul.u32.u64.compose %v183, %v178
    %v188 = vextract.low.u32 %v187
    %v189 = vextract.high.u32 %v187
    %v190 = vmul.u32 %v183, %v174
    %v191 = vadd.s32 %v186, %v188
    %vm192 = vc.u32 %v186, %v188
    %v193 = vadd.s32 %v189, 1
    %v194 = vsel %vm192, %v193, %v189
    %v195 = vadd.s32 %v190, %v194
    %v196 = vadd.s32 %v195, 536870912
    %v197 = vshrl.u32 %v196, 30
    %v198 = vshll.u32 %v197, 30
    %v199 = vsub.s32 %v195, %v198
    %vm200 = vcmp.lt.s32.totalorder %v199, 0
    %v201 = vsub.s32 0, %v199
    %v202 = vsel %vm200, %v201, %v199
    %v203 = vclz %v202
    %v204 = vsub.s32 %v203, 2
    %vm205 = vcmp.gt.s32.totalorder 0, %v204
    %v206 = vsel %vm205, 0, %v204
    %v207 = vsub.s32 32, %v206
    %v208 = vshll.u32 %v199, %v206
    %v209 = vshrl.u32 %v191, %v207
    %v210 = vor.u32 %v208, %v209
    %v211 = vsub.s32 4294967266, %v206
    %v212 = vadd.s32 %v211, 127
    %v213 = vshll.u32 %v212, 23
    %v214 = vor.u32 4788187, %v213
    %v215 = vand.u32 2147483647, %v214
    %v217 = vcvt.s32.f32 %v210
    %v218 = vmul.f32 %v217, %v215
    %v219 = vxor.u32 %v218, 2147483648
    %v220 = vsel %vm137, %v219, %v218
    %v221 = vsub.s32 4, %v197
    %v222 = vsel %vm137, %v221, %v197
    %v223 = vsel %vm136, %v132, %v220
    %v224 = vsel %vm136, 0, %v222
    %v225 = vcosq.f32.pop %v223
    %v226 = vsinq.f32.pop %v223
    %vm227 = vweird.f32 %v132
    %v228 = vand.u32 %v224, 3
    %vm229 = vcmp.lt.s32.totalorder %v228, 2
    %vm230 = vcmp.eq.s32.totalorder %v228, 0
    %v231 = vxor.u32 %v226, 2147483648
    %v232 = vsel %vm230, %v225, %v231
    %vm233 = vcmp.eq.s32.totalorder %v228, 2
    %v234 = vxor.u32 %v225, 2147483648
    %v235 = vsel %vm233, %v234, %v226
    %v236 = vsel %vm229, %v232, %v235
    %v237 = vsel %vm227, nan, %v236
    %v238 = vsub.f32 %v237, %v132
    %s239 = scalar_lea.vmem [#allocation5], 128
    %v240 = vld [vmem:[%s239] sm:$0xff]
    %v241 = vld [vmem:[%s239 + $0x8] sm:$0xff]
    %v242 = vld [vmem:[%s239 + $0x10] sm:$0xff]
    %v243 = vld [vmem:[%s239 + $0x18] sm:$0xff]
    %v244 = vld [vmem:[%s239 + $0x20] sm:$0xff]
    %v245 = vld [vmem:[%s239 + $0x28] sm:$0xff]
    %v246 = vld [vmem:[%s239 + $0x30] sm:$0xff]
    %v247 = vld [vmem:[%s239 + $0x38] sm:$0xff]
    %v248 = vld [vmem:[%s239 + $0x40] sm:$0xff]
    %v249 = vld [vmem:[%s239 + $0x48] sm:$0xff]
    %v250 = vld [vmem:[%s239 + $0x50] sm:$0xff]
    %v251 = vld [vmem:[%s239 + $0x58] sm:$0xff]
    %v252 = vld [vmem:[%s239 + $0x60] sm:$0xff]
    %v253 = vld [vmem:[%s239 + $0x68] sm:$0xff]
    %v254 = vld [vmem:[%s239 + $0x70] sm:$0xff]
    %v255 = vld [vmem:[%s239 + $0x78] sm:$0xff]
    %s256 = scalar_lea.vmem %s2, 1
    %v257 = vld [vmem:[%s256] sm:$0x1]
    %v259 = vlaneseq
    %v260 = vshrl.u32 %v259, 7
    %v261 = vsub.s32 0, %v260
    %v262 = vrot.slane %v257, %v261
    %264 = vmatprep.subr.mxu0 0.0
    %265 = vmatpush1.msra.mxu0 %v240
    %266 = vmatprep.subr.mxu0 0.0
    %267 = vmatpush1.msra.mxu0 %v241
    %268 = vmatprep.subr.mxu0 0.0
    %269 = vmatpush1.msra.mxu0 %v242
    %270 = vmatprep.subr.mxu0 0.0
    %271 = vmatpush1.msra.mxu0 %v243
    %272 = vmatprep.subr.mxu0 0.0
    %273 = vmatpush1.msra.mxu0 %v244
    %274 = vmatprep.subr.mxu0 0.0
    %275 = vmatpush1.msra.mxu0 %v245
    %276 = vmatprep.subr.mxu0 0.0
    %277 = vmatpush1.msra.mxu0 %v246
    %278 = vmatprep.subr.mxu0 0.0
    %279 = vmatpush1.msra.mxu0 %v247
    %280 = vmatprep.subr.mxu0 0.0
    %281 = vmatpush1.msra.mxu0 %v248
    %282 = vmatprep.subr.mxu0 0.0
    %283 = vmatpush1.msra.mxu0 %v249
    %284 = vmatprep.subr.mxu0 0.0
    %285 = vmatpush1.msra.mxu0 %v250
    %286 = vmatprep.subr.mxu0 0.0
    %287 = vmatpush1.msra.mxu0 %v251
    %288 = vmatprep.subr.mxu0 0.0
    %289 = vmatpush1.msra.mxu0 %v252
    %290 = vmatprep.subr.mxu0 0.0
    %291 = vmatpush1.msra.mxu0 %v253
    %292 = vmatprep.subr.mxu0 0.0
    %293 = vmatpush1.msra.mxu0 %v254
    %294 = vmatprep.subr.mxu0 0.0
    %295 = vmatpush1.msra.mxu0 %v255
    %296 = vmatprep.subr.mxu0 0.0
    %297 = vmatpush1.msra.mxu0 0.0
    %298 = vmatprep.subr.mxu0 0.0
    %299 = vmatpush1.msra.mxu0 0.0
    %300 = vmatprep.subr.mxu0 0.0
    %301 = vmatpush1.msra.mxu0 0.0
    %302 = vmatprep.subr.mxu0 0.0
    %303 = vmatpush1.msra.mxu0 0.0
    %304 = vmatprep.subr.mxu0 0.0
    %305 = vmatpush1.msra.mxu0 0.0
    %306 = vmatprep.subr.mxu0 0.0
    %307 = vmatpush1.msra.mxu0 0.0
    %308 = vmatprep.subr.mxu0 0.0
    %309 = vmatpush1.msra.mxu0 0.0
    %310 = vmatprep.subr.mxu0 0.0
    %311 = vmatpush1.msra.mxu0 0.0
    %312 = vmatprep.subr.mxu0 0.0
    %313 = vmatpush1.msra.mxu0 0.0
    %314 = vmatprep.subr.mxu0 0.0
    %315 = vmatpush1.msra.mxu0 0.0
    %316 = vmatprep.subr.mxu0 0.0
    %317 = vmatpush1.msra.mxu0 0.0
    %318 = vmatprep.subr.mxu0 0.0
    %319 = vmatpush1.msra.mxu0 0.0
    %320 = vmatprep.subr.mxu0 0.0
    %321 = vmatpush1.msra.mxu0 0.0
    %322 = vmatprep.subr.mxu0 0.0
    %323 = vmatpush1.msra.mxu0 0.0
    %324 = vmatprep.subr.mxu0 0.0
    %325 = vmatpush1.msra.mxu0 0.0
    %326 = vmatprep.subr.mxu0 0.0
    %327 = vmatpush1.msra.mxu0 0.0
    %328 = vmatprep.mubr.f32.mxu0 0.0
    %329 = vmatmul.mubr.f32.gmra.mrb[0].mxu0 %v238
    %v330 = vpop.f32.mrb[0].mxu0
    %v331 = vadd.f32 %v262, %v330
    %v332 = vpop.f32.mrb[0].mxu0
    %333 = vdwg.mxu0
    %v334 = vand.u32 2147483647, %v331
    %vm335 = vcmp.le.f32.partialorder %v334, 0.7853982
    %vm336 = vcmp.lt.s32.totalorder %v331, 0
    %v337 = vand.u32 %v331, 2139095040
    %v338 = vshrl.u32 %v337, 23
    %v339 = vsub.s32 %v338, 127
    %v340 = vand.u32 2147483647, %v331
    %v341 = vand.u32 %v340, 8388607
    %v342 = vor.u32 %v341, 8388608
    %v343 = vsub.s32 0, %v342
    %v344 = vadd.s32 %v339, 1
    %vm345 = vcmp.gt.s32.totalorder %v344, 0
    %v346 = vsel %vm345, %v344, 0
    %v347 = vshrl.u32 %v346, 5
    %v348 = vand.u32 %v346, 31
    %v349 = vsub.s32 32, %v348
    %v350 = vshrl.u32 683565275, %v349
    %v351 = vshll.u32 683565275, %v348
    %v352 = vshrl.u32 2475754826, %v349
    %v353 = vor.u32 %v351, %v352
    %v354 = vshll.u32 2475754826, %v348
    %v355 = vshrl.u32 2131351028, %v349
    %v356 = vor.u32 %v354, %v355
    %v357 = vshll.u32 2131351028, %v348
    %v358 = vshrl.u32 2102212464, %v349
    %v359 = vor.u32 %v357, %v358
    %v360 = vshll.u32 2102212464, %v348
    %v361 = vshrl.u32 920167782, %v349
    %v362 = vor.u32 %v360, %v361
    %v363 = vshll.u32 920167782, %v348
    %v364 = vshrl.u32 1326507024, %v349
    %v365 = vor.u32 %v363, %v364
    %vm366 = vcmp.lt.s32.totalorder %v347, 1
    %vm367 = vcmp.lt.s32.totalorder %v347, 2
    %vm368 = vcmp.lt.s32.totalorder %v347, 3
    %vm369 = vcmp.lt.s32.totalorder %v347, 4
    %v370 = vsel %vm366, %v350, %v353
    %v371 = vsel %vm369, %v359, 2102212464
    %v372 = vsel %vm368, %v356, %v371
    %v373 = vsel %vm367, %v370, %v372
    %v374 = vsel %vm366, %v353, %v356
    %v375 = vsel %vm369, %v362, 920167782
    %v376 = vsel %vm368, %v359, %v375
    %v377 = vsel %vm367, %v374, %v376
    %v378 = vsel %vm366, %v356, %v359
    %v379 = vsel %vm369, %v365, 1326507024
    %v380 = vsel %vm368, %v362, %v379
    %v381 = vsel %vm367, %v378, %v380
    %v382 = vshll.u32 %v342, 8
    %v383 = vmul.u32.u64.compose %v382, %v381
    %v384 = vextract.low.u32 %v383
    %v385 = vextract.high.u32 %v383
    %v386 = vmul.u32.u64.compose %v382, %v377
    %v387 = vextract.low.u32 %v386
    %v388 = vextract.high.u32 %v386
    %v389 = vmul.u32 %v382, %v373
    %v390 = vadd.s32 %v385, %v387
    %vm391 = vc.u32 %v385, %v387
    %v392 = vadd.s32 %v388, 1
    %v393 = vsel %vm391, %v392, %v388
    %v394 = vadd.s32 %v389, %v393
    %v395 = vadd.s32 %v394, 536870912
    %v396 = vshrl.u32 %v395, 30
    %v397 = vshll.u32 %v396, 30
    %v398 = vsub.s32 %v394, %v397
    %vm399 = vcmp.lt.s32.totalorder %v398, 0
    %v400 = vsub.s32 0, %v398
    %v401 = vsel %vm399, %v400, %v398
    %v402 = vclz %v401
    %v403 = vsub.s32 %v402, 2
    %vm404 = vcmp.gt.s32.totalorder 0, %v403
    %v405 = vsel %vm404, 0, %v403
    %v406 = vsub.s32 32, %v405
    %v407 = vshll.u32 %v398, %v405
    %v408 = vshrl.u32 %v390, %v406
    %v409 = vor.u32 %v407, %v408
    %v410 = vsub.s32 4294967266, %v405
    %v411 = vadd.s32 %v410, 127
    %v412 = vshll.u32 %v411, 23
    %v413 = vor.u32 4788187, %v412
    %v414 = vand.u32 2147483647, %v413
    %v416 = vcvt.s32.f32 %v409
    %v417 = vmul.f32 %v416, %v414
    %v418 = vxor.u32 %v417, 2147483648
    %v419 = vsel %vm336, %v418, %v417
    %v420 = vsub.s32 4, %v396
    %v421 = vsel %vm336, %v420, %v396
    %v422 = vsel %vm335, %v331, %v419
    %v423 = vsel %vm335, 0, %v421
    %v424 = vcosq.f32.pop %v422
    %v425 = vsinq.f32.pop %v422
    %vm426 = vweird.f32 %v331
    %v427 = vand.u32 %v423, 3
    %vm428 = vcmp.lt.s32.totalorder %v427, 2
    %vm429 = vcmp.eq.s32.totalorder %v427, 0
    %v430 = vxor.u32 %v425, 2147483648
    %v431 = vsel %vm429, %v424, %v430
    %vm432 = vcmp.eq.s32.totalorder %v427, 2
    %v433 = vxor.u32 %v424, 2147483648
    %v434 = vsel %vm432, %v433, %v425
    %v435 = vsel %vm428, %v431, %v434
    %v436 = vsel %vm426, nan, %v435
    %v437 = vsub.f32 %v436, %v331
    %s438 = scalar_lea.vmem [#allocation5], 256
    %v439 = vld [vmem:[%s438] sm:$0xff]
    %v440 = vld [vmem:[%s438 + $0x8] sm:$0xff]
    %v441 = vld [vmem:[%s438 + $0x10] sm:$0xff]
    %v442 = vld [vmem:[%s438 + $0x18] sm:$0xff]
    %v443 = vld [vmem:[%s438 + $0x20] sm:$0xff]
    %v444 = vld [vmem:[%s438 + $0x28] sm:$0xff]
    %v445 = vld [vmem:[%s438 + $0x30] sm:$0xff]
    %v446 = vld [vmem:[%s438 + $0x38] sm:$0xff]
    %v447 = vld [vmem:[%s438 + $0x40] sm:$0xff]
    %v448 = vld [vmem:[%s438 + $0x48] sm:$0xff]
    %v449 = vld [vmem:[%s438 + $0x50] sm:$0xff]
    %v450 = vld [vmem:[%s438 + $0x58] sm:$0xff]
    %v451 = vld [vmem:[%s438 + $0x60] sm:$0xff]
    %v452 = vld [vmem:[%s438 + $0x68] sm:$0xff]
    %v453 = vld [vmem:[%s438 + $0x70] sm:$0xff]
    %v454 = vld [vmem:[%s438 + $0x78] sm:$0xff]
    %s455 = scalar_lea.vmem %s2, 2
    %v456 = vld [vmem:[%s455] sm:$0x1]
    %v458 = vlaneseq
    %v459 = vshrl.u32 %v458, 7
    %v460 = vsub.s32 0, %v459
    %v461 = vrot.slane %v456, %v460
    %463 = vmatprep.subr.mxu0 0.0
    %464 = vmatpush1.msra.mxu0 %v439
    %465 = vmatprep.subr.mxu0 0.0
    %466 = vmatpush1.msra.mxu0 %v440
    %467 = vmatprep.subr.mxu0 0.0
    %468 = vmatpush1.msra.mxu0 %v441
    %469 = vmatprep.subr.mxu0 0.0
    %470 = vmatpush1.msra.mxu0 %v442
    %471 = vmatprep.subr.mxu0 0.0
    %472 = vmatpush1.msra.mxu0 %v443
    %473 = vmatprep.subr.mxu0 0.0
    %474 = vmatpush1.msra.mxu0 %v444
    %475 = vmatprep.subr.mxu0 0.0
    %476 = vmatpush1.msra.mxu0 %v445
    %477 = vmatprep.subr.mxu0 0.0
    %478 = vmatpush1.msra.mxu0 %v446
    %479 = vmatprep.subr.mxu0 0.0
    %480 = vmatpush1.msra.mxu0 %v447
    %481 = vmatprep.subr.mxu0 0.0
    %482 = vmatpush1.msra.mxu0 %v448
    %483 = vmatprep.subr.mxu0 0.0
    %484 = vmatpush1.msra.mxu0 %v449
    %485 = vmatprep.subr.mxu0 0.0
    %486 = vmatpush1.msra.mxu0 %v450
    %487 = vmatprep.subr.mxu0 0.0
    %488 = vmatpush1.msra.mxu0 %v451
    %489 = vmatprep.subr.mxu0 0.0
    %490 = vmatpush1.msra.mxu0 %v452
    %491 = vmatprep.subr.mxu0 0.0
    %492 = vmatpush1.msra.mxu0 %v453
    %493 = vmatprep.subr.mxu0 0.0
    %494 = vmatpush1.msra.mxu0 %v454
    %495 = vmatprep.subr.mxu0 0.0
    %496 = vmatpush1.msra.mxu0 0.0
    %497 = vmatprep.subr.mxu0 0.0
    %498 = vmatpush1.msra.mxu0 0.0
    %499 = vmatprep.subr.mxu0 0.0
    %500 = vmatpush1.msra.mxu0 0.0
    %501 = vmatprep.subr.mxu0 0.0
    %502 = vmatpush1.msra.mxu0 0.0
    %503 = vmatprep.subr.mxu0 0.0
    %504 = vmatpush1.msra.mxu0 0.0
    %505 = vmatprep.subr.mxu0 0.0
    %506 = vmatpush1.msra.mxu0 0.0
    %507 = vmatprep.subr.mxu0 0.0
    %508 = vmatpush1.msra.mxu0 0.0
    %509 = vmatprep.subr.mxu0 0.0
    %510 = vmatpush1.msra.mxu0 0.0
    %511 = vmatprep.subr.mxu0 0.0
    %512 = vmatpush1.msra.mxu0 0.0
    %513 = vmatprep.subr.mxu0 0.0
    %514 = vmatpush1.msra.mxu0 0.0
    %515 = vmatprep.subr.mxu0 0.0
    %516 = vmatpush1.msra.mxu0 0.0
    %517 = vmatprep.subr.mxu0 0.0
    %518 = vmatpush1.msra.mxu0 0.0
    %519 = vmatprep.subr.mxu0 0.0
    %520 = vmatpush1.msra.mxu0 0.0
    %521 = vmatprep.subr.mxu0 0.0
    %522 = vmatpush1.msra.mxu0 0.0
    %523 = vmatprep.subr.mxu0 0.0
    %524 = vmatpush1.msra.mxu0 0.0
    %525 = vmatprep.subr.mxu0 0.0
    %526 = vmatpush1.msra.mxu0 0.0
    %527 = vmatprep.mubr.f32.mxu0 0.0
    %528 = vmatmul.mubr.f32.gmra.mrb[0].mxu0 %v437
    %v529 = vpop.f32.mrb[0].mxu0
    %v530 = vadd.f32 %v461, %v529
    %v531 = vpop.f32.mrb[0].mxu0
    %532 = vdwg.mxu0
    %v533 = vand.u32 2147483647, %v530
    %vm534 = vcmp.le.f32.partialorder %v533, 0.7853982
    %vm535 = vcmp.lt.s32.totalorder %v530, 0
    %v536 = vand.u32 %v530, 2139095040
    %v537 = vshrl.u32 %v536, 23
    %v538 = vsub.s32 %v537, 127
    %v539 = vand.u32 2147483647, %v530
    %v540 = vand.u32 %v539, 8388607
    %v541 = vor.u32 %v540, 8388608
    %v542 = vsub.s32 0, %v541
    %v543 = vadd.s32 %v538, 1
    %vm544 = vcmp.gt.s32.totalorder %v543, 0
    %v545 = vsel %vm544, %v543, 0
    %v546 = vshrl.u32 %v545, 5
    %v547 = vand.u32 %v545, 31
    %v548 = vsub.s32 32, %v547
    %v549 = vshrl.u32 683565275, %v548
    %v550 = vshll.u32 683565275, %v547
    %v551 = vshrl.u32 2475754826, %v548
    %v552 = vor.u32 %v550, %v551
    %v553 = vshll.u32 2475754826, %v547
    %v554 = vshrl.u32 2131351028, %v548
    %v555 = vor.u32 %v553, %v554
    %v556 = vshll.u32 2131351028, %v547
    %v557 = vshrl.u32 2102212464, %v548
    %v558 = vor.u32 %v556, %v557
    %v559 = vshll.u32 2102212464, %v547
    %v560 = vshrl.u32 920167782, %v548
    %v561 = vor.u32 %v559, %v560
    %v562 = vshll.u32 920167782, %v547
    %v563 = vshrl.u32 1326507024, %v548
    %v564 = vor.u32 %v562, %v563
    %vm565 = vcmp.lt.s32.totalorder %v546, 1
    %vm566 = vcmp.lt.s32.totalorder %v546, 2
    %vm567 = vcmp.lt.s32.totalorder %v546, 3
    %vm568 = vcmp.lt.s32.totalorder %v546, 4
    %v569 = vsel %vm565, %v549, %v552
    %v570 = vsel %vm568, %v558, 2102212464
    %v571 = vsel %vm567, %v555, %v570
    %v572 = vsel %vm566, %v569, %v571
    %v573 = vsel %vm565, %v552, %v555
    %v574 = vsel %vm568, %v561, 920167782
    %v575 = vsel %vm567, %v558, %v574
    %v576 = vsel %vm566, %v573, %v575
    %v577 = vsel %vm565, %v555, %v558
    %v578 = vsel %vm568, %v564, 1326507024
    %v579 = vsel %vm567, %v561, %v578
    %v580 = vsel %vm566, %v577, %v579
    %v581 = vshll.u32 %v541, 8
    %v582 = vmul.u32.u64.compose %v581, %v580
    %v583 = vextract.low.u32 %v582
    %v584 = vextract.high.u32 %v582
    %v585 = vmul.u32.u64.compose %v581, %v576
    %v586 = vextract.low.u32 %v585
    %v587 = vextract.high.u32 %v585
    %v588 = vmul.u32 %v581, %v572
    %v589 = vadd.s32 %v584, %v586
    %vm590 = vc.u32 %v584, %v586
    %v591 = vadd.s32 %v587, 1
    %v592 = vsel %vm590, %v591, %v587
    %v593 = vadd.s32 %v588, %v592
    %v594 = vadd.s32 %v593, 536870912
    %v595 = vshrl.u32 %v594, 30
    %v596 = vshll.u32 %v595, 30
    %v597 = vsub.s32 %v593, %v596
    %vm598 = vcmp.lt.s32.totalorder %v597, 0
    %v599 = vsub.s32 0, %v597
    %v600 = vsel %vm598, %v599, %v597
    %v601 = vclz %v600
    %v602 = vsub.s32 %v601, 2
    %vm603 = vcmp.gt.s32.totalorder 0, %v602
    %v604 = vsel %vm603, 0, %v602
    %v605 = vsub.s32 32, %v604
    %v606 = vshll.u32 %v597, %v604
    %v607 = vshrl.u32 %v589, %v605
    %v608 = vor.u32 %v606, %v607
    %v609 = vsub.s32 4294967266, %v604
    %v610 = vadd.s32 %v609, 127
    %v611 = vshll.u32 %v610, 23
    %v612 = vor.u32 4788187, %v611
    %v613 = vand.u32 2147483647, %v612
    %v615 = vcvt.s32.f32 %v608
    %v616 = vmul.f32 %v615, %v613
    %v617 = vxor.u32 %v616, 2147483648
    %v618 = vsel %vm535, %v617, %v616
    %v619 = vsub.s32 4, %v595
    %v620 = vsel %vm535, %v619, %v595
    %v621 = vsel %vm534, %v530, %v618
    %v622 = vsel %vm534, 0, %v620
    %v623 = vcosq.f32.pop %v621
    %v624 = vsinq.f32.pop %v621
    %vm625 = vweird.f32 %v530
    %v626 = vand.u32 %v622, 3
    %vm627 = vcmp.lt.s32.totalorder %v626, 2
    %vm628 = vcmp.eq.s32.totalorder %v626, 0
    %v629 = vxor.u32 %v624, 2147483648
    %v630 = vsel %vm628, %v623, %v629
    %vm631 = vcmp.eq.s32.totalorder %v626, 2
    %v632 = vxor.u32 %v623, 2147483648
    %v633 = vsel %vm631, %v632, %v624
    %v634 = vsel %vm627, %v630, %v633
    %v635 = vsel %vm625, nan, %v634
    %v636 = vsub.f32 %v635, %v530
    %s637 = scalar_lea.vmem [#allocation5], 384
    %v638 = vld [vmem:[%s637] sm:$0xff]
    %v639 = vld [vmem:[%s637 + $0x8] sm:$0xff]
    %v640 = vld [vmem:[%s637 + $0x10] sm:$0xff]
    %v641 = vld [vmem:[%s637 + $0x18] sm:$0xff]
    %v642 = vld [vmem:[%s637 + $0x20] sm:$0xff]
    %v643 = vld [vmem:[%s637 + $0x28] sm:$0xff]
    %v644 = vld [vmem:[%s637 + $0x30] sm:$0xff]
    %v645 = vld [vmem:[%s637 + $0x38] sm:$0xff]
    %v646 = vld [vmem:[%s637 + $0x40] sm:$0xff]
    %v647 = vld [vmem:[%s637 + $0x48] sm:$0xff]
    %v648 = vld [vmem:[%s637 + $0x50] sm:$0xff]
    %v649 = vld [vmem:[%s637 + $0x58] sm:$0xff]
    %v650 = vld [vmem:[%s637 + $0x60] sm:$0xff]
    %v651 = vld [vmem:[%s637 + $0x68] sm:$0xff]
    %v652 = vld [vmem:[%s637 + $0x70] sm:$0xff]
    %v653 = vld [vmem:[%s637 + $0x78] sm:$0xff]
    %s654 = scalar_lea.vmem %s2, 3
    %v655 = vld [vmem:[%s654] sm:$0x1]
    %v657 = vlaneseq
    %v658 = vshrl.u32 %v657, 7
    %v659 = vsub.s32 0, %v658
    %v660 = vrot.slane %v655, %v659
    %662 = vmatprep.subr.mxu0 0.0
    %663 = vmatpush1.msra.mxu0 %v638
    %664 = vmatprep.subr.mxu0 0.0
    %665 = vmatpush1.msra.mxu0 %v639
    %666 = vmatprep.subr.mxu0 0.0
    %667 = vmatpush1.msra.mxu0 %v640
    %668 = vmatprep.subr.mxu0 0.0
    %669 = vmatpush1.msra.mxu0 %v641
    %670 = vmatprep.subr.mxu0 0.0
    %671 = vmatpush1.msra.mxu0 %v642
    %672 = vmatprep.subr.mxu0 0.0
    %673 = vmatpush1.msra.mxu0 %v643
    %674 = vmatprep.subr.mxu0 0.0
    %675 = vmatpush1.msra.mxu0 %v644
    %676 = vmatprep.subr.mxu0 0.0
    %677 = vmatpush1.msra.mxu0 %v645
    %678 = vmatprep.subr.mxu0 0.0
    %679 = vmatpush1.msra.mxu0 %v646
    %680 = vmatprep.subr.mxu0 0.0
    %681 = vmatpush1.msra.mxu0 %v647
    %682 = vmatprep.subr.mxu0 0.0
    %683 = vmatpush1.msra.mxu0 %v648
    %684 = vmatprep.subr.mxu0 0.0
    %685 = vmatpush1.msra.mxu0 %v649
    %686 = vmatprep.subr.mxu0 0.0
    %687 = vmatpush1.msra.mxu0 %v650
    %688 = vmatprep.subr.mxu0 0.0
    %689 = vmatpush1.msra.mxu0 %v651
    %690 = vmatprep.subr.mxu0 0.0
    %691 = vmatpush1.msra.mxu0 %v652
    %692 = vmatprep.subr.mxu0 0.0
    %693 = vmatpush1.msra.mxu0 %v653
    %694 = vmatprep.subr.mxu0 0.0
    %695 = vmatpush1.msra.mxu0 0.0
    %696 = vmatprep.subr.mxu0 0.0
    %697 = vmatpush1.msra.mxu0 0.0
    %698 = vmatprep.subr.mxu0 0.0
    %699 = vmatpush1.msra.mxu0 0.0
    %700 = vmatprep.subr.mxu0 0.0
    %701 = vmatpush1.msra.mxu0 0.0
    %702 = vmatprep.subr.mxu0 0.0
    %703 = vmatpush1.msra.mxu0 0.0
    %704 = vmatprep.subr.mxu0 0.0
    %705 = vmatpush1.msra.mxu0 0.0
    %706 = vmatprep.subr.mxu0 0.0
    %707 = vmatpush1.msra.mxu0 0.0
    %708 = vmatprep.subr.mxu0 0.0
    %709 = vmatpush1.msra.mxu0 0.0
    %710 = vmatprep.subr.mxu0 0.0
    %711 = vmatpush1.msra.mxu0 0.0
    %712 = vmatprep.subr.mxu0 0.0
    %713 = vmatpush1.msra.mxu0 0.0
    %714 = vmatprep.subr.mxu0 0.0
    %715 = vmatpush1.msra.mxu0 0.0
    %716 = vmatprep.subr.mxu0 0.0
    %717 = vmatpush1.msra.mxu0 0.0
    %718 = vmatprep.subr.mxu0 0.0
    %719 = vmatpush1.msra.mxu0 0.0
    %720 = vmatprep.subr.mxu0 0.0
    %721 = vmatpush1.msra.mxu0 0.0
    %722 = vmatprep.subr.mxu0 0.0
    %723 = vmatpush1.msra.mxu0 0.0
    %724 = vmatprep.subr.mxu0 0.0
    %725 = vmatpush1.msra.mxu0 0.0
    %726 = vmatprep.mubr.f32.mxu0 0.0
    %727 = vmatmul.mubr.f32.gmra.mrb[0].mxu0 %v636
    %v728 = vpop.f32.mrb[0].mxu0
    %v729 = vadd.f32 %v660, %v728
    %v730 = vpop.f32.mrb[0].mxu0
    %731 = vdwg.mxu0
    %v732 = vand.u32 2147483647, %v729
    %vm733 = vcmp.le.f32.partialorder %v732, 0.7853982
    %vm734 = vcmp.lt.s32.totalorder %v729, 0
    %v735 = vand.u32 %v729, 2139095040
    %v736 = vshrl.u32 %v735, 23
    %v737 = vsub.s32 %v736, 127
    %v738 = vand.u32 2147483647, %v729
    %v739 = vand.u32 %v738, 8388607
    %v740 = vor.u32 %v739, 8388608
    %v741 = vsub.s32 0, %v740
    %v742 = vadd.s32 %v737, 1
    %vm743 = vcmp.gt.s32.totalorder %v742, 0
    %v744 = vsel %vm743, %v742, 0
    %v745 = vshrl.u32 %v744, 5
    %v746 = vand.u32 %v744, 31
    %v747 = vsub.s32 32, %v746
    %v748 = vshrl.u32 683565275, %v747
    %v749 = vshll.u32 683565275, %v746
    %v750 = vshrl.u32 2475754826, %v747
    %v751 = vor.u32 %v749, %v750
    %v752 = vshll.u32 2475754826, %v746
    %v753 = vshrl.u32 2131351028, %v747
    %v754 = vor.u32 %v752, %v753
    %v755 = vshll.u32 2131351028, %v746
    %v756 = vshrl.u32 2102212464, %v747
    %v757 = vor.u32 %v755, %v756
    %v758 = vshll.u32 2102212464, %v746
    %v759 = vshrl.u32 920167782, %v747
    %v760 = vor.u32 %v758, %v759
    %v761 = vshll.u32 920167782, %v746
    %v762 = vshrl.u32 1326507024, %v747
    %v763 = vor.u32 %v761, %v762
    %vm764 = vcmp.lt.s32.totalorder %v745, 1
    %vm765 = vcmp.lt.s32.totalorder %v745, 2
    %vm766 = vcmp.lt.s32.totalorder %v745, 3
    %vm767 = vcmp.lt.s32.totalorder %v745, 4
    %v768 = vsel %vm764, %v748, %v751
    %v769 = vsel %vm767, %v757, 2102212464
    %v770 = vsel %vm766, %v754, %v769
    %v771 = vsel %vm765, %v768, %v770
    %v772 = vsel %vm764, %v751, %v754
    %v773 = vsel %vm767, %v760, 920167782
    %v774 = vsel %vm766, %v757, %v773
    %v775 = vsel %vm765, %v772, %v774
    %v776 = vsel %vm764, %v754, %v757
    %v777 = vsel %vm767, %v763, 1326507024
    %v778 = vsel %vm766, %v760, %v777
    %v779 = vsel %vm765, %v776, %v778
    %v780 = vshll.u32 %v740, 8
    %v781 = vmul.u32.u64.compose %v780, %v779
    %v782 = vextract.low.u32 %v781
    %v783 = vextract.high.u32 %v781
    %v784 = vmul.u32.u64.compose %v780, %v775
    %v785 = vextract.low.u32 %v784
    %v786 = vextract.high.u32 %v784
    %v787 = vmul.u32 %v780, %v771
    %v788 = vadd.s32 %v783, %v785
    %vm789 = vc.u32 %v783, %v785
    %v790 = vadd.s32 %v786, 1
    %v791 = vsel %vm789, %v790, %v786
    %v792 = vadd.s32 %v787, %v791
    %v793 = vadd.s32 %v792, 536870912
    %v794 = vshrl.u32 %v793, 30
    %v795 = vshll.u32 %v794, 30
    %v796 = vsub.s32 %v792, %v795
    %vm797 = vcmp.lt.s32.totalorder %v796, 0
    %v798 = vsub.s32 0, %v796
    %v799 = vsel %vm797, %v798, %v796
    %v800 = vclz %v799
    %v801 = vsub.s32 %v800, 2
    %vm802 = vcmp.gt.s32.totalorder 0, %v801
    %v803 = vsel %vm802, 0, %v801
    %v804 = vsub.s32 32, %v803
    %v805 = vshll.u32 %v796, %v803
    %v806 = vshrl.u32 %v788, %v804
    %v807 = vor.u32 %v805, %v806
    %v808 = vsub.s32 4294967266, %v803
    %v809 = vadd.s32 %v808, 127
    %v810 = vshll.u32 %v809, 23
    %v811 = vor.u32 4788187, %v810
    %v812 = vand.u32 2147483647, %v811
    %v814 = vcvt.s32.f32 %v807
    %v815 = vmul.f32 %v814, %v812
    %v816 = vxor.u32 %v815, 2147483648
    %v817 = vsel %vm734, %v816, %v815
    %v818 = vsub.s32 4, %v794
    %v819 = vsel %vm734, %v818, %v794
    %v820 = vsel %vm733, %v729, %v817
    %v821 = vsel %vm733, 0, %v819
    %v822 = vcosq.f32.pop %v820
    %v823 = vsinq.f32.pop %v820
    %vm824 = vweird.f32 %v729
    %v825 = vand.u32 %v821, 3
    %vm826 = vcmp.lt.s32.totalorder %v825, 2
    %vm827 = vcmp.eq.s32.totalorder %v825, 0
    %v828 = vxor.u32 %v823, 2147483648
    %v829 = vsel %vm827, %v822, %v828
    %vm830 = vcmp.eq.s32.totalorder %v825, 2
    %v831 = vxor.u32 %v822, 2147483648
    %v832 = vsel %vm830, %v831, %v823
    %v833 = vsel %vm826, %v829, %v832
    %v834 = vsel %vm824, nan, %v833
    %v835 = vsub.f32 %v834, %v729
    %836 = vst [vmem:[#allocation7] sm:$0xff] %v835
    // Predicated region
    $region22: #{ae_forward_fused.1} parent=1 // pred_check
      _
    $region23: #{ae_forward_fused.1} parent=1 // pred_check_branch
      %838 = sbr.rel (0) target = $region25
    $region24: #{ae_forward_fused.1} parent=1 // pred_region
      %s840 = ssub.s32 128, 128
      %841 = vsyncadd [#allocation4], %s840
      %s843 = sshll.u32 [#allocation7], 4
      %s844 = int_to_ptr.vmem [resolvable:$true] %s843
      %846 = dma.vmem_to_hbm [thread:$0]  %s844, 128, %s3, [#allocation4]
    $region25: #{ae_forward_fused.1} parent=1 // pred_fallthru
      _
    // Predicated region
    $region26: #{ae_forward_fused.1} parent=1 // pred_check
      _
    $region27: #{ae_forward_fused.1} parent=1 // pred_check_branch
      %848 = sbr.rel (0) target = $region29
    $region28: #{ae_forward_fused.1} parent=1 // pred_region
      %849 = dma.done [#allocation4], 128
    $region29: #{ae_forward_fused.1} parent=1 // pred_fallthru
      _
    %850 = vsyncpa [#allocation3], 1
    %851 = vsyncpa [#allocation6], 1
    %852 = vsyncpa [#allocation4], 1

</llo_original>
